<compile_context>
chip_gen: v7x
topology: tpu7x:2x2x1
jax: 0.10.0
libtpu: 0.0.40
codegen_flags: <defaults>
</compile_context>

<pallas_src>
import math
from functools import partial

import jax
import jax.numpy as jnp
from jax import lax
from jax.experimental import pallas as pl
from jax.experimental.pallas import tpu as pltpu


def _linear_kernel(x_ref, w_ref, b_ref, o_ref):
    # x_ref: (B, K)   w_ref: (N, K)  <- lane-dense (K on lanes, no transpose)
    # b_ref: (1, N)   o_ref: (B, N)
    acc = lax.dot_general(
        x_ref[...], w_ref[...],
        dimension_numbers=(((1,), (1,)), ((), ())),   # x @ W.T on the MXU
        preferred_element_type=jnp.float32,
    )
    o_ref[...] = (acc + b_ref[...].astype(jnp.float32)).astype(o_ref.dtype)


@partial(jax.jit, static_argnames=("use_bf16",))
def linear_forward(x, weight, bias, use_bf16=False):
    """x: (B, C, H, W); weight: (N, K) PyTorch layout; bias: (N,). -> (B, N)."""
    B = x.shape[0]
    K = math.prod(x.shape[1:])
    N = weight.shape[0]

    out_dtype = x.dtype
    x_flat = x.reshape(B, K)            # nn.Flatten-equivalent row-major view
    if use_bf16:                        # for real sizes: halves weight DMA
        x_flat = x_flat.astype(jnp.bfloat16)
        weight = weight.astype(jnp.bfloat16)
    b2d = bias.reshape(1, N)

    bytes_accessed = (x_flat.size * x_flat.dtype.itemsize
                      + weight.size * weight.dtype.itemsize
                      + bias.size * bias.dtype.itemsize
                      + B * N * out_dtype.itemsize)
    cost = pl.CostEstimate(
        flops=2 * B * K * N,
        transcendentals=0,
        bytes_accessed=bytes_accessed,
    )

    # Single un-gridded invocation, all operands VMEM-resident: no pipeline
    # prologue/epilogue, no double-buffering (optimal at this problem size).
    return pl.pallas_call(
        _linear_kernel,
        out_shape=jax.ShapeDtypeStruct((B, N), out_dtype),
        in_specs=[
            pl.BlockSpec(memory_space=pltpu.MemorySpace.VMEM),  # x (B, K)
            pl.BlockSpec(memory_space=pltpu.MemorySpace.VMEM),  # w (N, K)
            pl.BlockSpec(memory_space=pltpu.MemorySpace.VMEM),  # b (1, N)
        ],
        out_specs=pl.BlockSpec(memory_space=pltpu.MemorySpace.VMEM),
        compiler_params=pltpu.CompilerParams(
            # Allow XLA to fuse the activation producer (flatten reshape) into
            # the custom call; weight/bias are plain parameters, no fusion.
            allow_input_fusion=[True, False, False],
        ),
        cost_estimate=cost,
    )(x_flat, weight, b2d)


if __name__ == "__main__":
    # Module config: data_size = (C, H, W) = (4, 16, 16) -> input_size = 1024,
    # target_size = 32, batch = 2.
    data_size = (4, 16, 16)
    target_size = 32
    batch = 2
    input_size = math.prod(data_size)

    key = jax.random.PRNGKey(0)
    kx, kw, kb = jax.random.split(key, 3)

    x = jax.random.normal(kx, (batch,) + data_size, dtype=jnp.float32)

    # Deterministic parameter init mimicking nn.Linear's uniform(-bound, bound).
    bound = 1.0 / math.sqrt(input_size)
    weight = jax.random.uniform(kw, (target_size, input_size),
                                minval=-bound, maxval=bound, dtype=jnp.float32)
    bias = jax.random.uniform(kb, (target_size,),
                              minval=-bound, maxval=bound, dtype=jnp.float32)

    out = linear_forward(x, weight, bias)
    jax.block_until_ready(out)

    # Reference check in plain JAX (same math as the PyTorch forward).
    ref = x.reshape(batch, -1) @ weight.T + bias
    assert out.shape == (batch, target_size)
    assert jnp.allclose(out, ref, atol=1e-5, rtol=1e-5)

    print("KERNEL_OK")
</pallas_src>

<mosaic_0001>
module attributes {stable_mosaic.version = 11 : i64} {
  func.func @_linear_kernel(%arg0: memref<2x1024xf32, #tpu.memory_space<vmem>>, %arg1: memref<32x1024xf32, #tpu.memory_space<vmem>>, %arg2: memref<1x32xf32, #tpu.memory_space<vmem>>, %arg3: memref<2x32xf32, #tpu.memory_space<vmem>>) attributes {dimension_semantics = [], scalar_prefetch = 0 : i64, scratch_operands = 0 : i64, tpu.core_type = #tpu.core_type<tc>} {
    %c0 = arith.constant 0 : index
    %c0_0 = arith.constant 0 : index
    %0 = vector.load %arg0[%c0, %c0_0] : memref<2x1024xf32, #tpu.memory_space<vmem>>, vector<2x1024xf32>
    %c0_1 = arith.constant 0 : index
    %c0_2 = arith.constant 0 : index
    %1 = vector.load %arg1[%c0_1, %c0_2] : memref<32x1024xf32, #tpu.memory_space<vmem>>, vector<32x1024xf32>
    %cst = arith.constant dense<0.000000e+00> : vector<2x32xf32>
    %2 = tpu.matmul %0, %1, %cst {dimension_numbers = #tpu.dot_dimension_numbers<[1], [1], [0], [0], [0, 0, 1, 0], [], []>} : vector<2x1024xf32>, vector<32x1024xf32>, vector<2x32xf32> -> vector<2x32xf32>
    %c0_3 = arith.constant 0 : index
    %c0_4 = arith.constant 0 : index
    %3 = vector.load %arg2[%c0_3, %c0_4] : memref<1x32xf32, #tpu.memory_space<vmem>>, vector<1x32xf32>
    %4 = vector.broadcast %3 : vector<1x32xf32> to vector<2x32xf32>
    %5 = arith.addf %2, %4 : vector<2x32xf32>
    %c0_5 = arith.constant 0 : index
    %c0_6 = arith.constant 0 : index
    %6 = vector.load %arg3[%c0_5, %c0_6] : memref<2x32xf32, #tpu.memory_space<vmem>>, vector<2x32xf32>
    tpu.vector_store %arg3[%c0_5, %c0_6], %5 {strides = array<i32>} : memref<2x32xf32, #tpu.memory_space<vmem>>, vector<2x32xf32>,
    return
  }
}

</mosaic_0001>

<llo_original>
// kernel: linear_forward.1
$region0: #{linear_forward.1}
  #allocation0 [shape = 'u32[]', space=smem, size = 0x4, offset = 0x4, fixed_abs, tag = 'smem constant byte address 0x4 - core index']
  #allocation1 [shape = 'u32[144,128]{1,0:T(1,128)}', space=vmem, size = 0x12000, scoped, tag = 'internal scratch']
  %s0 = inlined_call_operand.vmem [shape: f32[2,1024], index: 0, kind: input, shape index: {}]
  %s1 = inlined_call_operand.hbm [shape: f32[32,1024], index: 1, kind: input, shape index: {}]
  %s2 = inlined_call_operand.vmem [shape: f32[1,32], index: 2, kind: input, shape index: {}]
  %s3 = inlined_call_operand.hbm [shape: f32[2,32], index: 3, kind: output, shape index: {}]
  %s4 = sld [smem:[#allocation0]]
  $region26: #{linear_forward.1} parent=0
    _
  %s6 = ssub.s32 1, %s4
  %s7 = scalar_select 0, %s6, %s4
  $region1: #{linear_forward.1} parent=0
    #allocation2 [shape = 'u8[131072]{0}', space=vmem, size = 0x20000, scoped, tag = 'input window, operand 1, single buffered']
    #allocation3 [shape = 's32[1]{0}', space=sflag, size = 0x4, scoped, tag = 'scoped memory for linear_forward.1']
    #allocation4 [shape = 's32[1]{0}', space=sflag, size = 0x4, scoped, tag = 'scoped memory for linear_forward.1']
    #allocation5 [shape = 'u8[1024]{0}', space=vmem, size = 0x400, scoped, tag = 'output window, operand 0, single buffered']
    %8 = vsyncpa [#allocation3], 0
    %9 = vsyncpa [#allocation4], 0
    // Predicated region
    $region2: #{linear_forward.1} parent=1 // pred_check
      _
    $region3: #{linear_forward.1} parent=1 // pred_check_branch
      %11 = sbr.rel (0) target = $region5
    $region4: #{linear_forward.1} parent=1 // pred_region
      _
    $region5: #{linear_forward.1} parent=1 // pred_fallthru
      _
    // Predicated region
    $region6: #{linear_forward.1} parent=1 // pred_check
      _
    $region7: #{linear_forward.1} parent=1 // pred_check_branch
      %13 = sbr.rel (0) target = $region9
    $region8: #{linear_forward.1} parent=1 // pred_region
      %s15 = ssub.s32 4096, 4096
      %16 = vsyncadd [#allocation3], %s15
      %s17 = sshll.u32 [#allocation2], 4
      %s18 = int_to_ptr.vmem [resolvable:$true] %s17
      %23 = dma.hbm_to_vmem [thread:$0]  %s1, 4096, %s18, [#allocation3], 1024, 1024, 64
    $region9: #{linear_forward.1} parent=1 // pred_fallthru
      _
    // Predicated region
    $region10: #{linear_forward.1} parent=1 // pred_check
      _
    $region11: #{linear_forward.1} parent=1 // pred_check_branch
      %25 = sbr.rel (0) target = $region13
    $region12: #{linear_forward.1} parent=1 // pred_region
      _
    $region13: #{linear_forward.1} parent=1 // pred_fallthru
      _
    // Predicated region
    $region14: #{linear_forward.1} parent=1 // pred_check
      _
    $region15: #{linear_forward.1} parent=1 // pred_check_branch
      %27 = sbr.rel (0) target = $region17
    $region16: #{linear_forward.1} parent=1 // pred_region
      %28 = dma.done [#allocation3], 4096
    $region17: #{linear_forward.1} parent=1 // pred_fallthru
      _
    %v29 = vld [vmem:[%s0] sm:$0xff]
    %v30 = vld [vmem:[%s0 + $0x8] sm:$0xff]
    %v31 = vld [vmem:[#allocation2] sm:$0xff]
    %v32 = vld [vmem:[#allocation2 + $0x8] sm:$0xff]
    %v33 = vld [vmem:[#allocation2 + $0x10] sm:$0xff]
    %v34 = vld [vmem:[#allocation2 + $0x18] sm:$0xff]
    %v35 = vld [vmem:[#allocation2 + $0x20] sm:$0xff]
    %v36 = vld [vmem:[#allocation2 + $0x28] sm:$0xff]
    %v37 = vld [vmem:[#allocation2 + $0x30] sm:$0xff]
    %v38 = vld [vmem:[#allocation2 + $0x38] sm:$0xff]
    %v39 = vld [vmem:[#allocation2 + $0x40] sm:$0xff]
    %v40 = vld [vmem:[#allocation2 + $0x48] sm:$0xff]
    %v41 = vld [vmem:[#allocation2 + $0x50] sm:$0xff]
    %v42 = vld [vmem:[#allocation2 + $0x58] sm:$0xff]
    %v43 = vld [vmem:[#allocation2 + $0x60] sm:$0xff]
    %v44 = vld [vmem:[#allocation2 + $0x68] sm:$0xff]
    %v45 = vld [vmem:[#allocation2 + $0x70] sm:$0xff]
    %v46 = vld [vmem:[#allocation2 + $0x78] sm:$0xff]
    %v47 = vld [vmem:[#allocation2 + $0x80] sm:$0xff]
    %v48 = vld [vmem:[#allocation2 + $0x88] sm:$0xff]
    %v49 = vld [vmem:[#allocation2 + $0x90] sm:$0xff]
    %v50 = vld [vmem:[#allocation2 + $0x98] sm:$0xff]
    %v51 = vld [vmem:[#allocation2 + $0xa0] sm:$0xff]
    %v52 = vld [vmem:[#allocation2 + $0xa8] sm:$0xff]
    %v53 = vld [vmem:[#allocation2 + $0xb0] sm:$0xff]
    %v54 = vld [vmem:[#allocation2 + $0xb8] sm:$0xff]
    %v55 = vld [vmem:[#allocation2 + $0xc0] sm:$0xff]
    %v56 = vld [vmem:[#allocation2 + $0xc8] sm:$0xff]
    %v57 = vld [vmem:[#allocation2 + $0xd0] sm:$0xff]
    %v58 = vld [vmem:[#allocation2 + $0xd8] sm:$0xff]
    %v59 = vld [vmem:[#allocation2 + $0xe0] sm:$0xff]
    %v60 = vld [vmem:[#allocation2 + $0xe8] sm:$0xff]
    %v61 = vld [vmem:[#allocation2 + $0xf0] sm:$0xff]
    %v62 = vld [vmem:[#allocation2 + $0xf8] sm:$0xff]
    %v63 = vld [vmem:[%s2] sm:$0x1]
    %v65 = vlaneseq
    %v66 = vshrl.u32 %v65, 7
    %v67 = vsub.s32 0, %v66
    %v68 = vrot.slane %v63, %v67
    %v72 = vcombine.high %v29, %v29
    %v74 = vunpack.c.l.s4 1983009808
    %v75 = vunpack.c.0.s8 %v74
    %v76 = vlaneseq
    %v77 = vshrl.u32 %v76, 7
    %v78 = vsub.s32 %v75, %v77
    %v79 = vrot.slane %v29, %v78
    %v81 = vunpack.c.l.s4 1983009808
    %v82 = vunpack.c.0.s8 %v81
    %v83 = vlaneseq
    %v84 = vshrl.u32 %v83, 7
    %v85 = vsub.s32 %v82, %v84
    %v86 = vrot.slane %v72, %v85
    %v87 = vcombine.high %v79, %v79
    %v88 = vcombine.high %v86, %v86
    %v89 = vcombine.high %v30, %v30
    %v91 = vunpack.c.l.s4 1983009808
    %v92 = vunpack.c.0.s8 %v91
    %v93 = vlaneseq
    %v94 = vshrl.u32 %v93, 7
    %v95 = vsub.s32 %v92, %v94
    %v96 = vrot.slane %v30, %v95
    %v98 = vunpack.c.l.s4 1983009808
    %v99 = vunpack.c.0.s8 %v98
    %v100 = vlaneseq
    %v101 = vshrl.u32 %v100, 7
    %v102 = vsub.s32 %v99, %v101
    %v103 = vrot.slane %v89, %v102
    %v104 = vcombine.high %v96, %v96
    %v105 = vcombine.high %v103, %v103
    %114 = vmatprep.subr.mxu0 %v32
    %115 = vmatpush1.xpose.msra.mxu0 %v31
    %116 = vmatprep.subr.mxu0 %v40
    %117 = vmatpush1.xpose.msra.mxu0 %v39
    %118 = vmatprep.subr.mxu0 %v48
    %119 = vmatpush1.xpose.msra.mxu0 %v47
    %120 = vmatprep.subr.mxu0 %v56
    %121 = vmatpush1.xpose.msra.mxu0 %v55
    %122 = vmatprep.subr.mxu0 0.0
    %123 = vmatpush1.xpose.msra.mxu0 0.0
    %124 = vmatprep.subr.mxu0 0.0
    %125 = vmatpush1.xpose.msra.mxu0 0.0
    %126 = vmatprep.subr.mxu0 0.0
    %127 = vmatpush1.xpose.msra.mxu0 0.0
    %128 = vmatprep.subr.mxu0 0.0
    %129 = vmatpush1.xpose.msra.mxu0 0.0
    %130 = vmatprep.subr.mxu0 0.0
    %131 = vmatpush1.xpose.msra.mxu0 0.0
    %132 = vmatprep.subr.mxu0 0.0
    %133 = vmatpush1.xpose.msra.mxu0 0.0
    %134 = vmatprep.subr.mxu0 0.0
    %135 = vmatpush1.xpose.msra.mxu0 0.0
    %136 = vmatprep.subr.mxu0 0.0
    %137 = vmatpush1.xpose.msra.mxu0 0.0
    %138 = vmatprep.subr.mxu0 0.0
    %139 = vmatpush1.xpose.msra.mxu0 0.0
    %140 = vmatprep.subr.mxu0 0.0
    %141 = vmatpush1.xpose.msra.mxu0 0.0
    %142 = vmatprep.subr.mxu0 0.0
    %143 = vmatpush1.xpose.msra.mxu0 0.0
    %144 = vmatprep.subr.mxu0 0.0
    %145 = vmatpush1.xpose.msra.mxu0 0.0
    %146 = vmatprep.subr.mxu0 0.0
    %147 = vmatpush1.xpose.msra.mxu0 0.0
    %148 = vmatprep.subr.mxu0 0.0
    %149 = vmatpush1.xpose.msra.mxu0 0.0
    %150 = vmatprep.subr.mxu0 0.0
    %151 = vmatpush1.xpose.msra.mxu0 0.0
    %152 = vmatprep.subr.mxu0 0.0
    %153 = vmatpush1.xpose.msra.mxu0 0.0
    %154 = vmatprep.subr.mxu0 0.0
    %155 = vmatpush1.xpose.msra.mxu0 0.0
    %156 = vmatprep.subr.mxu0 0.0
    %157 = vmatpush1.xpose.msra.mxu0 0.0
    %158 = vmatprep.subr.mxu0 0.0
    %159 = vmatpush1.xpose.msra.mxu0 0.0
    %160 = vmatprep.subr.mxu0 0.0
    %161 = vmatpush1.xpose.msra.mxu0 0.0
    %162 = vmatprep.subr.mxu0 0.0
    %163 = vmatpush1.xpose.msra.mxu0 0.0
    %164 = vmatprep.subr.mxu0 0.0
    %165 = vmatpush1.xpose.msra.mxu0 0.0
    %166 = vmatprep.subr.mxu0 0.0
    %167 = vmatpush1.xpose.msra.mxu0 0.0
    %168 = vmatprep.subr.mxu0 0.0
    %169 = vmatpush1.xpose.msra.mxu0 0.0
    %170 = vmatprep.subr.mxu0 0.0
    %171 = vmatpush1.xpose.msra.mxu0 0.0
    %172 = vmatprep.subr.mxu0 0.0
    %173 = vmatpush1.xpose.msra.mxu0 0.0
    %174 = vmatprep.subr.mxu0 0.0
    %175 = vmatpush1.xpose.msra.mxu0 0.0
    %176 = vmatprep.subr.mxu0 0.0
    %177 = vmatpush1.xpose.msra.mxu0 0.0
    %178 = vmatprep.mubr.f32.mxu0 %v87
    %179 = vmatmul.mubr.f32.gmra.mrb[0].mxu0 %v79
    %v180 = vpop.f32.mrb[0].mxu0
    %v181 = vadd.f32 %v68, %v180
    %v182 = vpop.f32.mrb[0].mxu0
    %183 = vdwg.mxu0
    %184 = vmatprep.subr.mxu0 %v34
    %185 = vmatpush1.xpose.msra.mxu0 %v33
    %186 = vmatprep.subr.mxu0 %v42
    %187 = vmatpush1.xpose.msra.mxu0 %v41
    %188 = vmatprep.subr.mxu0 %v50
    %189 = vmatpush1.xpose.msra.mxu0 %v49
    %190 = vmatprep.subr.mxu0 %v58
    %191 = vmatpush1.xpose.msra.mxu0 %v57
    %192 = vmatprep.subr.mxu0 0.0
    %193 = vmatpush1.xpose.msra.mxu0 0.0
    %194 = vmatprep.subr.mxu0 0.0
    %195 = vmatpush1.xpose.msra.mxu0 0.0
    %196 = vmatprep.subr.mxu0 0.0
    %197 = vmatpush1.xpose.msra.mxu0 0.0
    %198 = vmatprep.subr.mxu0 0.0
    %199 = vmatpush1.xpose.msra.mxu0 0.0
    %200 = vmatprep.subr.mxu0 0.0
    %201 = vmatpush1.xpose.msra.mxu0 0.0
    %202 = vmatprep.subr.mxu0 0.0
    %203 = vmatpush1.xpose.msra.mxu0 0.0
    %204 = vmatprep.subr.mxu0 0.0
    %205 = vmatpush1.xpose.msra.mxu0 0.0
    %206 = vmatprep.subr.mxu0 0.0
    %207 = vmatpush1.xpose.msra.mxu0 0.0
    %208 = vmatprep.subr.mxu0 0.0
    %209 = vmatpush1.xpose.msra.mxu0 0.0
    %210 = vmatprep.subr.mxu0 0.0
    %211 = vmatpush1.xpose.msra.mxu0 0.0
    %212 = vmatprep.subr.mxu0 0.0
    %213 = vmatpush1.xpose.msra.mxu0 0.0
    %214 = vmatprep.subr.mxu0 0.0
    %215 = vmatpush1.xpose.msra.mxu0 0.0
    %216 = vmatprep.subr.mxu0 0.0
    %217 = vmatpush1.xpose.msra.mxu0 0.0
    %218 = vmatprep.subr.mxu0 0.0
    %219 = vmatpush1.xpose.msra.mxu0 0.0
    %220 = vmatprep.subr.mxu0 0.0
    %221 = vmatpush1.xpose.msra.mxu0 0.0
    %222 = vmatprep.subr.mxu0 0.0
    %223 = vmatpush1.xpose.msra.mxu0 0.0
    %224 = vmatprep.subr.mxu0 0.0
    %225 = vmatpush1.xpose.msra.mxu0 0.0
    %226 = vmatprep.subr.mxu0 0.0
    %227 = vmatpush1.xpose.msra.mxu0 0.0
    %228 = vmatprep.subr.mxu0 0.0
    %229 = vmatpush1.xpose.msra.mxu0 0.0
    %230 = vmatprep.subr.mxu0 0.0
    %231 = vmatpush1.xpose.msra.mxu0 0.0
    %232 = vmatprep.subr.mxu0 0.0
    %233 = vmatpush1.xpose.msra.mxu0 0.0
    %234 = vmatprep.subr.mxu0 0.0
    %235 = vmatpush1.xpose.msra.mxu0 0.0
    %236 = vmatprep.subr.mxu0 0.0
    %237 = vmatpush1.xpose.msra.mxu0 0.0
    %238 = vmatprep.subr.mxu0 0.0
    %239 = vmatpush1.xpose.msra.mxu0 0.0
    %240 = vmatprep.subr.mxu0 0.0
    %241 = vmatpush1.xpose.msra.mxu0 0.0
    %242 = vmatprep.subr.mxu0 0.0
    %243 = vmatpush1.xpose.msra.mxu0 0.0
    %244 = vmatprep.subr.mxu0 0.0
    %245 = vmatpush1.xpose.msra.mxu0 0.0
    %246 = vmatprep.subr.mxu0 0.0
    %247 = vmatpush1.xpose.msra.mxu0 0.0
    %248 = vmatprep.mubr.f32.mxu0 %v88
    %249 = vmatmul.mubr.f32.gmra.mrb[0].mxu0 %v86
    %v250 = vpop.f32.mrb[0].mxu0
    %v251 = vadd.f32 %v181, %v250
    %v252 = vpop.f32.mrb[0].mxu0
    %253 = vdwg.mxu0
    %254 = vmatprep.subr.mxu0 %v36
    %255 = vmatpush1.xpose.msra.mxu0 %v35
    %256 = vmatprep.subr.mxu0 %v44
    %257 = vmatpush1.xpose.msra.mxu0 %v43
    %258 = vmatprep.subr.mxu0 %v52
    %259 = vmatpush1.xpose.msra.mxu0 %v51
    %260 = vmatprep.subr.mxu0 %v60
    %261 = vmatpush1.xpose.msra.mxu0 %v59
    %262 = vmatprep.subr.mxu0 0.0
    %263 = vmatpush1.xpose.msra.mxu0 0.0
    %264 = vmatprep.subr.mxu0 0.0
    %265 = vmatpush1.xpose.msra.mxu0 0.0
    %266 = vmatprep.subr.mxu0 0.0
    %267 = vmatpush1.xpose.msra.mxu0 0.0
    %268 = vmatprep.subr.mxu0 0.0
    %269 = vmatpush1.xpose.msra.mxu0 0.0
    %270 = vmatprep.subr.mxu0 0.0
    %271 = vmatpush1.xpose.msra.mxu0 0.0
    %272 = vmatprep.subr.mxu0 0.0
    %273 = vmatpush1.xpose.msra.mxu0 0.0
    %274 = vmatprep.subr.mxu0 0.0
    %275 = vmatpush1.xpose.msra.mxu0 0.0
    %276 = vmatprep.subr.mxu0 0.0
    %277 = vmatpush1.xpose.msra.mxu0 0.0
    %278 = vmatprep.subr.mxu0 0.0
    %279 = vmatpush1.xpose.msra.mxu0 0.0
    %280 = vmatprep.subr.mxu0 0.0
    %281 = vmatpush1.xpose.msra.mxu0 0.0
    %282 = vmatprep.subr.mxu0 0.0
    %283 = vmatpush1.xpose.msra.mxu0 0.0
    %284 = vmatprep.subr.mxu0 0.0
    %285 = vmatpush1.xpose.msra.mxu0 0.0
    %286 = vmatprep.subr.mxu0 0.0
    %287 = vmatpush1.xpose.msra.mxu0 0.0
    %288 = vmatprep.subr.mxu0 0.0
    %289 = vmatpush1.xpose.msra.mxu0 0.0
    %290 = vmatprep.subr.mxu0 0.0
    %291 = vmatpush1.xpose.msra.mxu0 0.0
    %292 = vmatprep.subr.mxu0 0.0
    %293 = vmatpush1.xpose.msra.mxu0 0.0
    %294 = vmatprep.subr.mxu0 0.0
    %295 = vmatpush1.xpose.msra.mxu0 0.0
    %296 = vmatprep.subr.mxu0 0.0
    %297 = vmatpush1.xpose.msra.mxu0 0.0
    %298 = vmatprep.subr.mxu0 0.0
    %299 = vmatpush1.xpose.msra.mxu0 0.0
    %300 = vmatprep.subr.mxu0 0.0
    %301 = vmatpush1.xpose.msra.mxu0 0.0
    %302 = vmatprep.subr.mxu0 0.0
    %303 = vmatpush1.xpose.msra.mxu0 0.0
    %304 = vmatprep.subr.mxu0 0.0
    %305 = vmatpush1.xpose.msra.mxu0 0.0
    %306 = vmatprep.subr.mxu0 0.0
    %307 = vmatpush1.xpose.msra.mxu0 0.0
    %308 = vmatprep.subr.mxu0 0.0
    %309 = vmatpush1.xpose.msra.mxu0 0.0
    %310 = vmatprep.subr.mxu0 0.0
    %311 = vmatpush1.xpose.msra.mxu0 0.0
    %312 = vmatprep.subr.mxu0 0.0
    %313 = vmatpush1.xpose.msra.mxu0 0.0
    %314 = vmatprep.subr.mxu0 0.0
    %315 = vmatpush1.xpose.msra.mxu0 0.0
    %316 = vmatprep.subr.mxu0 0.0
    %317 = vmatpush1.xpose.msra.mxu0 0.0
    %318 = vmatprep.mubr.f32.mxu0 %v104
    %319 = vmatmul.mubr.f32.gmra.mrb[0].mxu0 %v96
    %v320 = vpop.f32.mrb[0].mxu0
    %v321 = vadd.f32 %v251, %v320
    %v322 = vpop.f32.mrb[0].mxu0
    %323 = vdwg.mxu0
    %324 = vmatprep.subr.mxu0 %v38
    %325 = vmatpush1.xpose.msra.mxu0 %v37
    %326 = vmatprep.subr.mxu0 %v46
    %327 = vmatpush1.xpose.msra.mxu0 %v45
    %328 = vmatprep.subr.mxu0 %v54
    %329 = vmatpush1.xpose.msra.mxu0 %v53
    %330 = vmatprep.subr.mxu0 %v62
    %331 = vmatpush1.xpose.msra.mxu0 %v61
    %332 = vmatprep.subr.mxu0 0.0
    %333 = vmatpush1.xpose.msra.mxu0 0.0
    %334 = vmatprep.subr.mxu0 0.0
    %335 = vmatpush1.xpose.msra.mxu0 0.0
    %336 = vmatprep.subr.mxu0 0.0
    %337 = vmatpush1.xpose.msra.mxu0 0.0
    %338 = vmatprep.subr.mxu0 0.0
    %339 = vmatpush1.xpose.msra.mxu0 0.0
    %340 = vmatprep.subr.mxu0 0.0
    %341 = vmatpush1.xpose.msra.mxu0 0.0
    %342 = vmatprep.subr.mxu0 0.0
    %343 = vmatpush1.xpose.msra.mxu0 0.0
    %344 = vmatprep.subr.mxu0 0.0
    %345 = vmatpush1.xpose.msra.mxu0 0.0
    %346 = vmatprep.subr.mxu0 0.0
    %347 = vmatpush1.xpose.msra.mxu0 0.0
    %348 = vmatprep.subr.mxu0 0.0
    %349 = vmatpush1.xpose.msra.mxu0 0.0
    %350 = vmatprep.subr.mxu0 0.0
    %351 = vmatpush1.xpose.msra.mxu0 0.0
    %352 = vmatprep.subr.mxu0 0.0
    %353 = vmatpush1.xpose.msra.mxu0 0.0
    %354 = vmatprep.subr.mxu0 0.0
    %355 = vmatpush1.xpose.msra.mxu0 0.0
    %356 = vmatprep.subr.mxu0 0.0
    %357 = vmatpush1.xpose.msra.mxu0 0.0
    %358 = vmatprep.subr.mxu0 0.0
    %359 = vmatpush1.xpose.msra.mxu0 0.0
    %360 = vmatprep.subr.mxu0 0.0
    %361 = vmatpush1.xpose.msra.mxu0 0.0
    %362 = vmatprep.subr.mxu0 0.0
    %363 = vmatpush1.xpose.msra.mxu0 0.0
    %364 = vmatprep.subr.mxu0 0.0
    %365 = vmatpush1.xpose.msra.mxu0 0.0
    %366 = vmatprep.subr.mxu0 0.0
    %367 = vmatpush1.xpose.msra.mxu0 0.0
    %368 = vmatprep.subr.mxu0 0.0
    %369 = vmatpush1.xpose.msra.mxu0 0.0
    %370 = vmatprep.subr.mxu0 0.0
    %371 = vmatpush1.xpose.msra.mxu0 0.0
    %372 = vmatprep.subr.mxu0 0.0
    %373 = vmatpush1.xpose.msra.mxu0 0.0
    %374 = vmatprep.subr.mxu0 0.0
    %375 = vmatpush1.xpose.msra.mxu0 0.0
    %376 = vmatprep.subr.mxu0 0.0
    %377 = vmatpush1.xpose.msra.mxu0 0.0
    %378 = vmatprep.subr.mxu0 0.0
    %379 = vmatpush1.xpose.msra.mxu0 0.0
    %380 = vmatprep.subr.mxu0 0.0
    %381 = vmatpush1.xpose.msra.mxu0 0.0
    %382 = vmatprep.subr.mxu0 0.0
    %383 = vmatpush1.xpose.msra.mxu0 0.0
    %384 = vmatprep.subr.mxu0 0.0
    %385 = vmatpush1.xpose.msra.mxu0 0.0
    %386 = vmatprep.subr.mxu0 0.0
    %387 = vmatpush1.xpose.msra.mxu0 0.0
    %388 = vmatprep.mubr.f32.mxu0 %v105
    %389 = vmatmul.mubr.f32.gmra.mrb[0].mxu0 %v103
    %v390 = vpop.f32.mrb[0].mxu0
    %v391 = vadd.f32 %v321, %v390
    %v392 = vpop.f32.mrb[0].mxu0
    %393 = vdwg.mxu0
    %vm394 = vcmask 254976
    %395 = vst.msk [vmem:[#allocation5] sm:$0x3] %vm394, %v391
    // Predicated region
    $region18: #{linear_forward.1} parent=1 // pred_check
      _
    $region19: #{linear_forward.1} parent=1 // pred_check_branch
      %397 = sbr.rel (0) target = $region21
    $region20: #{linear_forward.1} parent=1 // pred_region
      %s399 = ssub.s32 32, 32
      %400 = vsyncadd [#allocation4], %s399
      %s402 = sshll.u32 [#allocation5], 4
      %s403 = int_to_ptr.vmem [resolvable:$true] %s402
      %405 = dma.vmem_to_hbm [thread:$0]  %s403, 32, %s3, [#allocation4]
    $region21: #{linear_forward.1} parent=1 // pred_fallthru
      _
    // Predicated region
    $region22: #{linear_forward.1} parent=1 // pred_check
      _
    $region23: #{linear_forward.1} parent=1 // pred_check_branch
      %407 = sbr.rel (0) target = $region25
    $region24: #{linear_forward.1} parent=1 // pred_region
      %408 = dma.done [#allocation4], 32
    $region25: #{linear_forward.1} parent=1 // pred_fallthru
      _
    %409 = vsyncpa [#allocation3], 1
    %410 = vsyncpa [#allocation4], 1

</llo_original>
